<compile_context>
chip_gen: v5e
topology: v5e:2x2
jax: 0.10.0
libtpu: 0.0.40
codegen_flags: <defaults>
</compile_context>

<pallas_src>
import math
import functools

import jax
import jax.numpy as jnp
from jax.experimental import pallas as pl
from jax.experimental.pallas import tpu as pltpu


def arc_margin_kernel(feat_ref, label_ref, wn_ref, out_ref, *,
                      cos_m, sin_m, th, mm, s_scale, block_n, compute_dtype):
    """One (batch-tile, class-tile) grid step of ArcMarginProduct.forward (eval).

    feat_ref : [TB, H]   f32           CLS hidden states (un-normalized)
    label_ref: [TB, 1]   int32         labels
    wn_ref   : [H, TN]   compute_dtype pre-normalized class weights (transposed)
    out_ref  : [TB, TN]  f32           scaled ArcFace logits
    """
    # F.normalize(input, dim=1): x / max(||x||, 1e-12)  (rsqrt -> EUP slot, co-issues)
    feat = feat_ref[...]
    inv_norm = jax.lax.rsqrt(
        jnp.maximum(jnp.sum(feat * feat, axis=-1, keepdims=True), 1e-24))
    f = (feat * inv_norm).astype(compute_dtype)

    # cosine = F.linear(normalize(input), normalize(weight))
    # (weight normalization is static -> hoisted to the wrapper)
    cosine = jnp.dot(f, wn_ref[...], preferred_element_type=jnp.float32)  # [TB, TN] f32

    # Clamp 1 - cos^2 at 0: MXU rounding can push |cosine| a few ULPs past 1 -> NaN.
    sine = jnp.sqrt(jnp.maximum(1.0 - cosine * cosine, 0.0))
    phi = cosine * cos_m - sine * sin_m
    phi = jnp.where(cosine > th, phi, cosine - mm)          # easy_margin=False

    # one_hot.scatter_(1, label, 1), tile-local over this class tile.
    lbl = label_ref[...]                                     # [TB, 1] int32
    col0 = pl.program_id(1) * block_n
    cls_ids = jax.lax.broadcasted_iota(jnp.int32, cosine.shape, 1) + col0
    is_target = cls_ids == lbl                               # [TB, TN] bool
    # ls_eps == 0.0 -> no label-smoothing branch.
    out_ref[...] = jnp.where(is_target, phi, cosine) * s_scale


def _pick_tile(dim, candidates):
    """Largest candidate that evenly divides `dim`, else the full dim (toy shapes)."""
    for c in candidates:
        if dim % c == 0 and dim >= c:
            return c
    return dim


def bert_arcface_forward(last_hidden_state, label, arc_weight, *,
                         s=30.0, m=0.5,
                         compute_dtype=jnp.bfloat16,
                         block_b=None, block_n=None):
    """Forward of BertModel minus the BERT encoder itself.

    last_hidden_state: [B, S, H] f32 (BERT output); label: [B] int; arc_weight: [N, H].
    Returns [B, N] f32 ArcFace logits.
    """
    B, _, H = last_hidden_state.shape
    n_classes = arc_weight.shape[0]

    # get_bert_features: CLS token state (cheap slice, done in the wrapper).
    cls = last_hidden_state[:, 0, :].astype(jnp.float32)               # [B, H]

    # Hoisted static work: F.normalize(self.weight) + transpose to [H, N]
    # (classes land on the lane axis -> lane-dense weight / output tiles).
    w = arc_weight.astype(jnp.float32)
    wn = w * jax.lax.rsqrt(jnp.maximum(jnp.sum(w * w, axis=-1, keepdims=True), 1e-24))
    wn_t = wn.T.astype(compute_dtype)                                  # [H, N]

    label2d = label.reshape(B, 1).astype(jnp.int32)

    # Tile sizes: batch tiles in multiples of 128 (MXU M), class tiles in multiples of
    # 128 lanes, capped at 4096 so the bf16 weight tile x double-buffering fits v7x's
    # 64 MiB VMEM as well as v5e/v6e.
    tb = block_b or _pick_tile(B, (256, 128, 64, 32, 16, 8))
    tn = block_n or _pick_tile(n_classes, (4096, 2048, 1024, 512, 256, 128))
    grid = (B // tb, n_classes // tn)

    itemsize = jnp.dtype(compute_dtype).itemsize
    tile_bytes = tb * H * 4 + tb * 4 + H * tn * itemsize + tb * tn * 4
    vmem_limit = int(min(max(4 * tile_bytes + (8 << 20), 32 << 20), 64 << 20))

    kern = functools.partial(
        arc_margin_kernel,
        cos_m=math.cos(m), sin_m=math.sin(m),
        th=math.cos(math.pi - m), mm=math.sin(math.pi - m) * m,
        s_scale=s, block_n=tn, compute_dtype=compute_dtype,
    )

    return pl.pallas_call(
        kern,
        out_shape=jax.ShapeDtypeStruct((B, n_classes), jnp.float32),
        grid=grid,
        in_specs=[
            pl.BlockSpec((tb, H), lambda i, j: (i, 0)),    # CLS features: per batch tile
            pl.BlockSpec((tb, 1), lambda i, j: (i, 0)),    # labels: per batch tile
            pl.BlockSpec((H, tn), lambda i, j: (0, j)),    # normalized weights: per class tile
        ],
        out_specs=pl.BlockSpec((tb, tn), lambda i, j: (i, j)),
        compiler_params=pltpu.CompilerParams(
            dimension_semantics=("parallel", "parallel"),
            vmem_limit_bytes=vmem_limit,
        ),
    )(cls, label2d, wn_t)


def reference_forward(last_hidden_state, label, arc_weight, *, s=30.0, m=0.5):
    """Pure-JAX reference mirroring the PyTorch forward (BERT output -> ArcFace)."""
    cls = last_hidden_state[:, 0, :]
    f = cls / jnp.maximum(jnp.linalg.norm(cls, axis=-1, keepdims=True), 1e-12)
    wn = arc_weight / jnp.maximum(
        jnp.linalg.norm(arc_weight, axis=-1, keepdims=True), 1e-12)
    cosine = f @ wn.T
    sine = jnp.sqrt(jnp.maximum(0.0, 1.0 - cosine ** 2))
    cos_m, sin_m = math.cos(m), math.sin(m)
    th, mm = math.cos(math.pi - m), math.sin(math.pi - m) * m
    phi = jnp.where(cosine > th, cosine * cos_m - sine * sin_m, cosine - mm)
    n_classes = arc_weight.shape[0]
    one_hot = jax.nn.one_hot(label, n_classes, dtype=cosine.dtype)
    return (one_hot * phi + (1.0 - one_hot) * cosine) * s


if __name__ == "__main__":
    # Small shapes consistent with the module: batch=2, seq=8, hidden=32, classes=16.
    B, S, H, N_CLASSES = 2, 8, 32, 16

    key = jax.random.PRNGKey(0)
    khid, karc, klbl = jax.random.split(key, 3)

    last_hidden_state = jax.random.normal(khid, (B, S, H), dtype=jnp.float32)
    label = jax.random.randint(klbl, (B,), 0, N_CLASSES, dtype=jnp.int32)
    bound = math.sqrt(6.0 / (N_CLASSES + H))                 # xavier_uniform_
    arc_w = jax.random.uniform(karc, (N_CLASSES, H), jnp.float32,
                               minval=-bound, maxval=bound)

    ref = reference_forward(last_hidden_state, label, arc_w)

    # f32 compute path: tight correctness check.
    out_f32 = jax.block_until_ready(
        bert_arcface_forward(last_hidden_state, label, arc_w,
                             compute_dtype=jnp.float32))
    assert out_f32.shape == (B, N_CLASSES)
    err32 = float(jnp.max(jnp.abs(out_f32 - ref)))
    assert jnp.allclose(out_f32, ref, rtol=1e-4, atol=2e-3), (
        f"f32 max abs err = {err32}")

    # bf16 matmul path (default / production on v6e+): loose check (logits are x30).
    out_bf16 = jax.block_until_ready(
        bert_arcface_forward(last_hidden_state, label, arc_w,
                             compute_dtype=jnp.bfloat16))
    errbf = float(jnp.max(jnp.abs(out_bf16 - ref)))
    assert jnp.allclose(out_bf16, ref, rtol=5e-2, atol=5e-1), (
        f"bf16 max abs err = {errbf}")

    print("KERNEL_OK")
</pallas_src>

<mosaic_0001>
module attributes {stable_mosaic.version = 11 : i64} {
  func.func @arc_margin_kernel(%arg0: i32, %arg1: i32, %arg2: memref<2x32xf32, #tpu.memory_space<vmem>>, %arg3: memref<2x1xi32, #tpu.memory_space<vmem>>, %arg4: memref<32x16xf32, #tpu.memory_space<vmem>>, %arg5: memref<2x16xf32, #tpu.memory_space<vmem>>) attributes {dimension_semantics = [#tpu.dimension_semantics<parallel>, #tpu.dimension_semantics<parallel>], iteration_bounds = array<i64: 1, 1>, scalar_prefetch = 0 : i64, scratch_operands = 0 : i64, tpu.core_type = #tpu.core_type<tc>, window_params = [{transform_indices = @transform_0, window_bounds = array<i64: 2, 32>}, {transform_indices = @transform_1, window_bounds = array<i64: 2, 1>}, {transform_indices = @transform_2, window_bounds = array<i64: 32, 16>}, {transform_indices = @transform_3, window_bounds = array<i64: 2, 16>}]} {
    %c0 = arith.constant 0 : index
    %c0_0 = arith.constant 0 : index
    %0 = vector.load %arg2[%c0, %c0_0] : memref<2x32xf32, #tpu.memory_space<vmem>>, vector<2x32xf32>
    %1 = arith.mulf %0, %0 : vector<2x32xf32>
    %cst = arith.constant dense<0.000000e+00> : vector<2xf32>
    %2 = vector.multi_reduction <add>, %1, %cst [1] : vector<2x32xf32> to vector<2xf32>
    %3 = vector.shape_cast %2 : vector<2xf32> to vector<2x1xf32>
    %cst_1 = arith.constant 1.000000e-24 : f32
    %4 = vector.broadcast %cst_1 : f32 to vector<2x1xf32>
    %5 = arith.maximumf %3, %4 : vector<2x1xf32>
    %6 = math.rsqrt %5 : vector<2x1xf32>
    %7 = vector.broadcast %6 : vector<2x1xf32> to vector<2x32xf32>
    %8 = arith.mulf %0, %7 : vector<2x32xf32>
    %c0_2 = arith.constant 0 : index
    %c0_3 = arith.constant 0 : index
    %9 = vector.load %arg4[%c0_2, %c0_3] : memref<32x16xf32, #tpu.memory_space<vmem>>, vector<32x16xf32>
    %cst_4 = arith.constant dense<0.000000e+00> : vector<2x16xf32>
    %10 = tpu.matmul %8, %9, %cst_4 {dimension_numbers = #tpu.dot_dimension_numbers<[1], [0], [0], [1], [0, 0, 1, 1], [], []>} : vector<2x32xf32>, vector<32x16xf32>, vector<2x16xf32> -> vector<2x16xf32>
    %11 = arith.mulf %10, %10 : vector<2x16xf32>
    %cst_5 = arith.constant 1.000000e+00 : f32
    %12 = vector.broadcast %cst_5 : f32 to vector<2x16xf32>
    %13 = arith.subf %12, %11 : vector<2x16xf32>
    %cst_6 = arith.constant 0.000000e+00 : f32
    %14 = vector.broadcast %cst_6 : f32 to vector<2x16xf32>
    %15 = arith.maximumf %13, %14 : vector<2x16xf32>
    %16 = math.sqrt %15 : vector<2x16xf32>
    %cst_7 = arith.constant 0.87758255 : f32
    %17 = vector.broadcast %cst_7 : f32 to vector<2x16xf32>
    %18 = arith.mulf %10, %17 : vector<2x16xf32>
    %cst_8 = arith.constant 0.47942555 : f32
    %19 = vector.broadcast %cst_8 : f32 to vector<2x16xf32>
    %20 = arith.mulf %16, %19 : vector<2x16xf32>
    %21 = arith.subf %18, %20 : vector<2x16xf32>
    %cst_9 = arith.constant -0.87758255 : f32
    %22 = vector.broadcast %cst_9 : f32 to vector<2x16xf32>
    %23 = arith.cmpf ogt, %10, %22 : vector<2x16xf32>
    %cst_10 = arith.constant 0.239712775 : f32
    %24 = vector.broadcast %cst_10 : f32 to vector<2x16xf32>
    %25 = arith.subf %10, %24 : vector<2x16xf32>
    %26 = arith.select %23, %21, %25 : vector<2x16xi1>, vector<2x16xf32>
    %c0_11 = arith.constant 0 : index
    %c0_12 = arith.constant 0 : index
    %27 = vector.load %arg3[%c0_11, %c0_12] : memref<2x1xi32, #tpu.memory_space<vmem>>, vector<2x1xi32>
    %c16_i32 = arith.constant 16 : i32
    %28 = arith.muli %arg1, %c16_i32 : i32
    %29 = tpu.iota {dimensions = array<i32: 1>} : vector<2x16xi32>
    %30 = vector.broadcast %28 : i32 to vector<2x16xi32>
    %31 = arith.addi %29, %30 : vector<2x16xi32>
    %32 = vector.broadcast %27 : vector<2x1xi32> to vector<2x16xi32>
    %33 = arith.cmpi eq, %31, %32 : vector<2x16xi32>
    %34 = arith.select %33, %26, %10 : vector<2x16xi1>, vector<2x16xf32>
    %cst_13 = arith.constant 3.000000e+01 : f32
    %35 = vector.broadcast %cst_13 : f32 to vector<2x16xf32>
    %36 = arith.mulf %34, %35 : vector<2x16xf32>
    %c0_14 = arith.constant 0 : index
    %c0_15 = arith.constant 0 : index
    %37 = vector.load %arg5[%c0_14, %c0_15] : memref<2x16xf32, #tpu.memory_space<vmem>>, vector<2x16xf32>
    tpu.vector_store %arg5[%c0_14, %c0_15], %36 {strides = array<i32>} : memref<2x16xf32, #tpu.memory_space<vmem>>, vector<2x16xf32>,
    return
  }
  func.func @transform_0(%arg0: i32, %arg1: i32) -> (i32, i32) {
    %c0_i32 = arith.constant 0 : i32
    %c0_i32_0 = arith.constant 0 : i32
    return %arg0, %c0_i32 : i32, i32
  }
  func.func @transform_1(%arg0: i32, %arg1: i32) -> (i32, i32) {
    %c0_i32 = arith.constant 0 : i32
    %c0_i32_0 = arith.constant 0 : i32
    return %arg0, %c0_i32 : i32, i32
  }
  func.func @transform_2(%arg0: i32, %arg1: i32) -> (i32, i32) {
    %c0_i32 = arith.constant 0 : i32
    %c0_i32_0 = arith.constant 0 : i32
    return %c0_i32, %arg1 : i32, i32
  }
  func.func @transform_3(%arg0: i32, %arg1: i32) -> (i32, i32) {
    %c0_i32 = arith.constant 0 : i32
    return %arg0, %arg1 : i32, i32
  }
}

</mosaic_0001>

<llo_original>
// kernel: tpu_custom_call.1
$region0: #{tpu_custom_call.1}
  #allocation0 [shape = 'u32[]', space=smem, size = 0x4, offset = 0x4, fixed_abs, tag = 'smem constant byte address 0x4 - core index']
  #allocation1 [shape = 'u32[72,128]{1,0:T(1,128)}', space=vmem, size = 0x9000, scoped, tag = 'internal scratch']
  %s0 = inlined_call_operand.vmem [shape: f32[2,32], index: 0, kind: input, shape index: {}]
  %s1 = inlined_call_operand.vmem [shape: s32[2,1], index: 1, kind: input, shape index: {}]
  %s2 = inlined_call_operand.vmem [shape: f32[32,16], index: 2, kind: input, shape index: {}]
  %s3 = inlined_call_operand.hbm [shape: f32[2,16], index: 3, kind: output, shape index: {}]
  %s4 = sld [smem:[#allocation0]]
  $region22: #{tpu_custom_call.1} parent=0
    _
  %s6 = ssub.s32 1, %s4
  %s7 = scalar_select 0, %s6, %s4
  $region1: #{tpu_custom_call.1} parent=0
    #allocation2 [shape = 'u8[1024]{0}', space=vmem, size = 0x400, scoped, tag = 'output window, operand 0, single buffered']
    #allocation3 [shape = 's32[1]{0}', space=sflag, size = 0x4, scoped, tag = 'scoped memory for tpu_custom_call.1']
    %8 = vsyncpa [#allocation3], 0
    // Predicated region
    $region2: #{tpu_custom_call.1} parent=1 // pred_check
      _
    $region3: #{tpu_custom_call.1} parent=1 // pred_check_branch
      %10 = sbr.rel (0) target = $region5
    $region4: #{tpu_custom_call.1} parent=1 // pred_region
      _
    $region5: #{tpu_custom_call.1} parent=1 // pred_fallthru
      _
    // Predicated region
    $region6: #{tpu_custom_call.1} parent=1 // pred_check
      _
    $region7: #{tpu_custom_call.1} parent=1 // pred_check_branch
      %12 = sbr.rel (0) target = $region9
    $region8: #{tpu_custom_call.1} parent=1 // pred_region
      _
    $region9: #{tpu_custom_call.1} parent=1 // pred_fallthru
      _
    // Predicated region
    $region10: #{tpu_custom_call.1} parent=1 // pred_check
      _
    $region11: #{tpu_custom_call.1} parent=1 // pred_check_branch
      %14 = sbr.rel (0) target = $region13
    $region12: #{tpu_custom_call.1} parent=1 // pred_region
      _
    $region13: #{tpu_custom_call.1} parent=1 // pred_fallthru
      _
    %v15 = vld [vmem:[%s0] sm:$0x3]
    %v16 = vmul.f32 %v15, %v15
    %vm17 = vcmask 254976
    %v18 = vsel %vm17, %v16, 0.0
    %19 = vadd.xlane.f32.xlu0 %v18
    %v20 = vpop.xlane.xlu0 %19
    %v21 = vmax.f32 %v20, 1e-24
    %v22 = vrsqrt.pop %v21
    %v23 = vmul.f32 %v22, %v21
    %v24 = vmul.f32 %v23, %v22
    %v25 = vmul.f32 0.5, %v24
    %v26 = vsub.f32 1.5, %v25
    %v27 = vmul.f32 %v22, %v26
    %vm28 = vweird.f32 %v21
    %vm29 = vweird.f32 %v22
    %vm30 = vmor %vm28, %vm29
    %v31 = vsel %vm30, %v22, %v27
    %v32 = vmul.f32 %v15, %v31
    %v33 = vld [vmem:[%s2] sm:$0xff]
    %v34 = vld [vmem:[%s2 + $0x8] sm:$0xff]
    %v35 = vld [vmem:[%s2 + $0x10] sm:$0xff]
    %v36 = vld [vmem:[%s2 + $0x18] sm:$0xff]
    %vm37 = vcmask 261120
    %v39 = vsel %vm37, %v32, 0
    %41 = vmatpush.msra.mxu0 0.0
    %42 = vmatpush.msra.mxu0 0.0
    %43 = vmatpush.msra.mxu0 0.0
    %44 = vmatpush.msra.mxu0 0.0
    %45 = vmatpush.msra.mxu0 0.0
    %46 = vmatpush.msra.mxu0 0.0
    %47 = vmatpush.msra.mxu0 0.0
    %48 = vmatpush.msra.mxu0 0.0
    %49 = vmatpush.msra.mxu0 0.0
    %50 = vmatpush.msra.mxu0 0.0
    %51 = vmatpush.msra.mxu0 0.0
    %52 = vmatpush.msra.mxu0 0.0
    %53 = vmatpush.msra.mxu0 %v36
    %54 = vmatpush.msra.mxu0 %v35
    %55 = vmatpush.msra.mxu0 %v34
    %56 = vmatpush.msra.mxu0 %v33
    %57 = vmatmul.f32.gmra.mxu0 %v39
    %v58 = vpop.f32.mrf.mxu0
    %v59 = vadd.f32 0.0, %v58
    %60 = vdwg.mxu0
    %v61 = vmul.f32 %v59, %v59
    %v62 = vsub.f32 1.0, %v61
    %v63 = vmax.f32 %v62, 0.0
    %v64 = vrsqrt.pop %v63
    %v65 = vmul.f32 %v64, %v63
    %v66 = vmul.f32 %v65, %v64
    %v67 = vmul.f32 0.5, %v66
    %v68 = vsub.f32 1.5, %v67
    %v69 = vmul.f32 %v64, %v68
    %v70 = vmul.f32 %v63, %v69
    %vm71 = vcmp.eq.f32.partialorder %v63, inf
    %v72 = vsel %vm71, %v63, %v70
    %vm73 = vcmp.eq.f32.partialorder %v63, 0.0
    %v74 = vand.u32 %v63, 2147483648
    %v75 = vsel %vm73, %v74, %v72
    %v76 = vmul.f32 %v59, 0.87758255
    %v77 = vmul.f32 %v75, 0.47942555
    %v78 = vsub.f32 %v76, %v77
    %vm79 = vcmp.gt.f32.partialorder %v59, -0.87758255
    %v80 = vsub.f32 %v59, 0.23971277
    %v81 = vsel %vm79, %v78, %v80
    %v82 = vld [vmem:[%s1] sm:$0x3]
    %s83 = smul.u32 0, 16
    %v84 = vlaneseq
    %v85 = vand.u32 %v84, 127
    %v86 = vstv %s83
    %v87 = vadd.s32 %v85, %v86
    %88 = vset.pattern.permute.xlu0 0
    %89 = vperm.xlu0 %88, %v82
    %v90 = vpop.permute.xlu0 %89
    %vm91 = vcmp.eq.s32.totalorder %v87, %v90
    %v92 = vsel %vm91, %v81, %v59
    %v93 = vmul.f32 %v92, 30.0
    %vm94 = vcmask 123904
    %95 = vst.msk [vmem:[#allocation2] sm:$0x3] %vm94, %v93
    // Predicated region
    $region14: #{tpu_custom_call.1} parent=1 // pred_check
      _
    $region15: #{tpu_custom_call.1} parent=1 // pred_check_branch
      %97 = sbr.rel (0) target = $region17
    $region16: #{tpu_custom_call.1} parent=1 // pred_region
      %99 = vsyncadd [#allocation3], 0
      %s101 = sshll.u32 [#allocation2], 4
      %s102 = int_to_ptr.vmem [resolvable:$true] %s101
      %s103 = sshll.u32 %s3, 4
      %s104 = int_to_ptr.hbm [resolvable:$true] %s103
      %106 = dma.vmem_to_hbm [thread:$0]  %s102, 32, %s104, [#allocation3]
    $region17: #{tpu_custom_call.1} parent=1 // pred_fallthru
      _
    // Predicated region
    $region18: #{tpu_custom_call.1} parent=1 // pred_check
      _
    $region19: #{tpu_custom_call.1} parent=1 // pred_check_branch
      %108 = sbr.rel (0) target = $region21
    $region20: #{tpu_custom_call.1} parent=1 // pred_region
      %110 = dma.done [#allocation3], 32
    $region21: #{tpu_custom_call.1} parent=1 // pred_fallthru
      _
    %111 = vsyncpa [#allocation3], 1

</llo_original>
